<compile_context>
chip_gen: v7x
topology: tpu7x:2x2x1
jax: 0.10.0
libtpu: 0.0.40
codegen_flags: <defaults>
</compile_context>

<pallas_src>
import jax
import jax.numpy as jnp
from jax.experimental import pallas as pl
from jax.experimental.pallas import tpu as pltpu

LANES = 128          # lane width of a vreg; batch maps onto this axis
TILE_ROWS = 512      # (512, 128) f32 = 256 KiB per block; fits all TPU generations


def _linear_kernel(w_ref, b_ref, x_ref, o_ref):
    # w_ref/b_ref: (1,) f32 scalars in SMEM; x_ref/o_ref: (tile_rows, 128) f32 in VMEM.
    # Pure VPU FMA with in-register scalar broadcast -- no MXU, no masked stores.
    o_ref[...] = x_ref[...] * w_ref[0] + b_ref[0]


def _round_up(a, m):
    return (a + m - 1) // m * m


def linear_forward(x, w, b, tile_rows=TILE_ROWS):
    """x: [N, 1] f32, w: [1, 1] f32 (pre-transposed [in, out]), b: [1, 1] f32 -> [N, 1]."""
    n, in_dim = x.shape
    out_dim = w.shape[1]
    assert in_dim == 1 and out_dim == 1, "kernel specialized for nn.Linear(1, 1)"

    # Scalar parameters as tiny 1-D arrays for the SMEM/scalar path.
    w_s = w.reshape(1).astype(jnp.float32)
    b_s = b.reshape(1).astype(jnp.float32)

    # Lane-dense layout: put the batch axis on lanes -> [rows, 128].
    rows = pl.cdiv(n, LANES)
    if rows <= tile_rows:
        tile_r = max(rows, 1)          # single block; full-array dims are always legal
        rows_pad = tile_r
    else:
        tile_r = tile_rows             # multiple of 8 -> satisfies (8, 128) tiling
        rows_pad = _round_up(rows, tile_r)
    n_pad = rows_pad * LANES

    x2 = jnp.pad(x.reshape(-1), (0, n_pad - n)).reshape(rows_pad, LANES)

    grid = (rows_pad // tile_r,)

    out2 = pl.pallas_call(
        _linear_kernel,
        out_shape=jax.ShapeDtypeStruct((rows_pad, LANES), x.dtype),
        grid=grid,
        in_specs=[
            pl.BlockSpec(memory_space=pltpu.MemorySpace.SMEM),   # w scalar
            pl.BlockSpec(memory_space=pltpu.MemorySpace.SMEM),   # b scalar
            pl.BlockSpec((tile_r, LANES), lambda i: (i, 0)),     # x tile
        ],
        out_specs=pl.BlockSpec((tile_r, LANES), lambda i: (i, 0)),
        compiler_params=pltpu.CompilerParams(
            dimension_semantics=("parallel",),        # batch axis has no carried state
            vmem_limit_bytes=32 * 1024 * 1024,        # explicit; safe on v5e/v6e/v7x
        ),
    )(w_s, b_s, x2)

    # Drop pad rows and restore [N, out_dim] layout.
    return out2.reshape(-1)[:n].reshape(n, out_dim)


if __name__ == "__main__":
    input_dim = 1
    output_dim = 1
    batch = 8  # small batch of scalar samples, consistent with LinearRegressModel

    key = jax.random.PRNGKey(0)
    kx, kw, kb, kx2 = jax.random.split(key, 4)

    # Deterministic parameter init (mimics nn.Linear's uniform(-1/sqrt(in), 1/sqrt(in)))
    bound = 1.0 / (input_dim ** 0.5)
    w = jax.random.uniform(kw, (input_dim, output_dim), jnp.float32, -bound, bound)
    b = jax.random.uniform(kb, (1, output_dim), jnp.float32, -bound, bound)

    x = jax.random.normal(kx, (batch, input_dim), jnp.float32)

    out = linear_forward(x, w, b)
    out = jax.block_until_ready(out)

    ref = x @ w + b
    assert out.shape == (batch, output_dim)
    assert jnp.allclose(out, ref, atol=1e-5, rtol=1e-5)

    # Secondary check: batch not a multiple of 128 exercises the pad/slice path.
    x_big = jax.random.normal(kx2, (300, input_dim), jnp.float32)
    out_big = jax.block_until_ready(linear_forward(x_big, w, b))
    ref_big = x_big @ w + b
    assert out_big.shape == (300, output_dim)
    assert jnp.allclose(out_big, ref_big, atol=1e-5, rtol=1e-5)

    print("KERNEL_OK")
</pallas_src>

<mosaic_0001>
module attributes {stable_mosaic.version = 11 : i64} {
  func.func @_linear_kernel(%arg0: i32, %arg1: memref<1xf32, #tpu.memory_space<smem>>, %arg2: memref<1xf32, #tpu.memory_space<smem>>, %arg3: memref<1x128xf32, #tpu.memory_space<vmem>>, %arg4: memref<1x128xf32, #tpu.memory_space<vmem>>) attributes {dimension_semantics = [#tpu.dimension_semantics<parallel>], iteration_bounds = array<i64: 1>, scalar_prefetch = 0 : i64, scratch_operands = 0 : i64, tpu.core_type = #tpu.core_type<tc>, window_params = [{transform_indices = @transform_0, window_bounds = array<i64: 1>}, {transform_indices = @transform_1, window_bounds = array<i64: 1>}, {transform_indices = @transform_2, window_bounds = array<i64: 1, 128>}, {transform_indices = @transform_3, window_bounds = array<i64: 1, 128>}]} {
    %c0 = arith.constant 0 : index
    %c0_0 = arith.constant 0 : index
    %0 = vector.load %arg3[%c0, %c0_0] : memref<1x128xf32, #tpu.memory_space<vmem>>, vector<1x128xf32>
    %c0_1 = arith.constant 0 : index
    %1 = memref.load %arg1[%c0_1] : memref<1xf32, #tpu.memory_space<smem>>
    %2 = vector.broadcast %1 : f32 to vector<1x128xf32>
    %3 = arith.mulf %0, %2 : vector<1x128xf32>
    %c0_2 = arith.constant 0 : index
    %4 = memref.load %arg2[%c0_2] : memref<1xf32, #tpu.memory_space<smem>>
    %5 = vector.broadcast %4 : f32 to vector<1x128xf32>
    %6 = arith.addf %3, %5 : vector<1x128xf32>
    %c0_3 = arith.constant 0 : index
    %c0_4 = arith.constant 0 : index
    %7 = vector.load %arg4[%c0_3, %c0_4] : memref<1x128xf32, #tpu.memory_space<vmem>>, vector<1x128xf32>
    tpu.vector_store %arg4[%c0_3, %c0_4], %6 {strides = array<i32>} : memref<1x128xf32, #tpu.memory_space<vmem>>, vector<1x128xf32>,
    return
  }
  func.func @transform_0(%arg0: i32) -> i32 {
    %c0_i32 = arith.constant 0 : i32
    %c0_i32_0 = arith.constant 0 : i32
    return %c0_i32 : i32
  }
  func.func @transform_1(%arg0: i32) -> i32 {
    %c0_i32 = arith.constant 0 : i32
    %c0_i32_0 = arith.constant 0 : i32
    return %c0_i32 : i32
  }
  func.func @transform_2(%arg0: i32) -> (i32, i32) {
    %c0_i32 = arith.constant 0 : i32
    %c0_i32_0 = arith.constant 0 : i32
    return %arg0, %c0_i32 : i32, i32
  }
  func.func @transform_3(%arg0: i32) -> (i32, i32) {
    %c0_i32 = arith.constant 0 : i32
    %c0_i32_0 = arith.constant 0 : i32
    return %arg0, %c0_i32 : i32, i32
  }
}

</mosaic_0001>

<llo_original>
// kernel: tpu_custom_call.1
$region0: #{tpu_custom_call.1}
  #allocation0 [shape = 'u32[]', space=smem, size = 0x4, offset = 0x4, fixed_abs, tag = 'smem constant byte address 0x4 - core index']
  #allocation1 [shape = 'u32[144,128]{1,0:T(1,128)}', space=vmem, size = 0x12000, scoped, tag = 'internal scratch']
  #allocation2 [shape = 'f32[1]{0:T(128)S(6)}', space=smem, size = 0x200, scoped, tag = 'scoped memory for tpu_custom_call.1']
  #allocation3 [shape = 'f32[1]{0:T(128)S(6)}', space=smem, size = 0x200, scoped, tag = 'scoped memory for tpu_custom_call.1']
  %s0 = inlined_call_operand.<no memory space> [shape: f32[1], index: 0, kind: input, shape index: {}]
  %s1 = inlined_call_operand.<no memory space> [shape: f32[1], index: 1, kind: input, shape index: {}]
  %s2 = inlined_call_operand.vmem [shape: f32[1,128], index: 2, kind: input, shape index: {}]
  %s3 = inlined_call_operand.hbm [shape: f32[1,128], index: 3, kind: output, shape index: {}]
  %s4 = sld [smem:[#allocation0]]
  $region22: #{tpu_custom_call.1} parent=0
    _
  %s6 = ssub.s32 1, %s4
  %s7 = scalar_select 0, %s6, %s4
  %8 = sst [smem:[#allocation2]] %s0
  %9 = sst [smem:[#allocation3]] %s1
  $region1: #{tpu_custom_call.1} parent=0
    #allocation4 [shape = 'u8[512]{0}', space=vmem, size = 0x400, scoped, tag = 'output window, operand 0, single buffered']
    #allocation5 [shape = 's32[1]{0}', space=sflag, size = 0x4, scoped, tag = 'scoped memory for tpu_custom_call.1']
    %10 = vsyncpa [#allocation5], 0
    // Predicated region
    $region2: #{tpu_custom_call.1} parent=1 // pred_check
      _
    $region3: #{tpu_custom_call.1} parent=1 // pred_check_branch
      %12 = sbr.rel (0) target = $region5
    $region4: #{tpu_custom_call.1} parent=1 // pred_region
      _
    $region5: #{tpu_custom_call.1} parent=1 // pred_fallthru
      _
    // Predicated region
    $region6: #{tpu_custom_call.1} parent=1 // pred_check
      _
    $region7: #{tpu_custom_call.1} parent=1 // pred_check_branch
      %14 = sbr.rel (0) target = $region9
    $region8: #{tpu_custom_call.1} parent=1 // pred_region
      _
    $region9: #{tpu_custom_call.1} parent=1 // pred_fallthru
      _
    // Predicated region
    $region10: #{tpu_custom_call.1} parent=1 // pred_check
      _
    $region11: #{tpu_custom_call.1} parent=1 // pred_check_branch
      %16 = sbr.rel (0) target = $region13
    $region12: #{tpu_custom_call.1} parent=1 // pred_region
      _
    $region13: #{tpu_custom_call.1} parent=1 // pred_fallthru
      _
    %v17 = vld [vmem:[%s2] sm:$0x1]
    %s18 = sld [smem:[#allocation2]]
    %v19 = vstv %s18
    %v20 = vmul.f32 %v17, %v19
    %s21 = sld [smem:[#allocation3]]
    %v22 = vstv %s21
    %v23 = vadd.f32 %v20, %v22
    %24 = vst [vmem:[#allocation4] sm:$0x1] %v23
    // Predicated region
    $region14: #{tpu_custom_call.1} parent=1 // pred_check
      _
    $region15: #{tpu_custom_call.1} parent=1 // pred_check_branch
      %26 = sbr.rel (0) target = $region17
    $region16: #{tpu_custom_call.1} parent=1 // pred_region
      %s28 = ssub.s32 16, 16
      %29 = vsyncadd [#allocation5], %s28
      %s31 = sshll.u32 [#allocation4], 4
      %s32 = int_to_ptr.vmem [resolvable:$true] %s31
      %34 = dma.vmem_to_hbm [thread:$0]  %s32, 16, %s3, [#allocation5]
    $region17: #{tpu_custom_call.1} parent=1 // pred_fallthru
      _
    // Predicated region
    $region18: #{tpu_custom_call.1} parent=1 // pred_check
      _
    $region19: #{tpu_custom_call.1} parent=1 // pred_check_branch
      %36 = sbr.rel (0) target = $region21
    $region20: #{tpu_custom_call.1} parent=1 // pred_region
      %37 = dma.done [#allocation5], 16
    $region21: #{tpu_custom_call.1} parent=1 // pred_fallthru
      _
    %38 = vsyncpa [#allocation5], 1

</llo_original>
